<compile_context>
chip_gen: v5e
topology: v5e:2x2
jax: 0.10.0
libtpu: 0.0.40
codegen_flags: <defaults>
</compile_context>

<pallas_src>
import jax
import jax.numpy as jnp
import numpy as np
from jax.experimental import pallas as pl
from jax.experimental.pallas import tpu as pltpu


# -----------------------------------------------------------------------------
# Pallas kernel
# -----------------------------------------------------------------------------
def _det_head_kernel(x_ref, wh_ref, mult_ref, xs_ref, ys_ref, cx_ref, cy_ref, o_ref):
    """x_ref: (R, HW) features; o_ref: (HW, R) transposed output.

    Constants (all f32):
      wh_ref   (R,1): 1.0 for rows holding tw/th, else 0.0
      mult_ref (R,1): stride for tx/ty rows, anchor_w/h for tw/th rows, 1.0 for obj/cls
      xs_ref   (R,1): stride for tx rows else 0.0
      ys_ref   (R,1): stride for ty rows else 0.0
      cx_ref  (1,HW): cell x offset (cell % G)
      cy_ref  (1,HW): cell y offset (cell // G)
    """
    x = x_ref[...].astype(jnp.float32)            # upcast in-kernel (bf16-friendly I/O)
    is_wh = wh_ref[...] > 0.5                      # (R,1) -> broadcast over lanes

    # Single EUP exp per element: exp(x) for w/h rows, exp(-x) otherwise.
    t = jnp.where(is_wh, x, -x)
    e = jnp.exp(t)
    sig = 1.0 / (1.0 + e)                          # == sigmoid(x) for the non-wh rows
    val = jnp.where(is_wh, e, sig)

    # Fused scale + offsets:
    #   tx/ty : sigmoid(x)*stride + cell_offset*stride
    #   tw/th : exp(x)*anchor              ((anchor/stride)*stride cancels)
    #   obj/cls: sigmoid(x)
    out = val * mult_ref[...] + xs_ref[...] * cx_ref[...] + ys_ref[...] * cy_ref[...]

    # Write already transposed -> final (B, HW*A, D) view is free (no XLA transpose).
    o_ref[...] = out.T.astype(o_ref.dtype)


# -----------------------------------------------------------------------------
# Wrapper: one detection scale
# -----------------------------------------------------------------------------
def predict_transform_pallas(x, inp_dim, anchors, num_classes):
    """Pallas equivalent of the YOLOv3 `predict_transform` for one scale."""
    B, C, H, W = x.shape
    A = len(anchors)
    D = 5 + num_classes
    assert C == A * D and H == W, "channel count must be num_anchors*(5+num_classes)"
    G = H
    stride = inp_dim // G
    HW = G * G
    R = A * D

    # ---- static per-row / per-cell constants (hoisted out of the kernel) ----
    d_idx = np.arange(R) % D                       # attribute index within one anchor
    a_idx = np.arange(R) // D                      # anchor index
    aw = np.asarray([float(w) for (w, _h) in anchors], np.float32)
    ah = np.asarray([float(h) for (_w, h) in anchors], np.float32)

    wh_flag = ((d_idx == 2) | (d_idx == 3)).astype(np.float32)
    mult = np.where(
        d_idx < 2, np.float32(stride),
        np.where(d_idx == 2, aw[a_idx],
                 np.where(d_idx == 3, ah[a_idx], np.float32(1.0)))).astype(np.float32)
    xs = np.where(d_idx == 0, np.float32(stride), np.float32(0.0)).astype(np.float32)
    ys = np.where(d_idx == 1, np.float32(stride), np.float32(0.0)).astype(np.float32)

    cells = np.arange(HW)
    cx = (cells % G).astype(np.float32)
    cy = (cells // G).astype(np.float32)

    # free view; keep the input dtype (bf16 upstream -> half the DMA bytes)
    x_flat = x.reshape(B, R, HW)

    row_spec = pl.BlockSpec((R, 1), lambda b: (0, 0))     # tiny, DMA'd once
    col_spec = pl.BlockSpec((1, HW), lambda b: (0, 0))

    out = pl.pallas_call(
        _det_head_kernel,
        grid=(B,),
        in_specs=[
            pl.BlockSpec((None, R, HW), lambda b: (b, 0, 0)),   # whole scale per step
            row_spec, row_spec, row_spec, row_spec,
            col_spec, col_spec,
        ],
        out_specs=pl.BlockSpec((None, HW, R), lambda b: (b, 0, 0)),
        out_shape=jax.ShapeDtypeStruct((B, HW, R), jnp.float32),
        compiler_params=pltpu.CompilerParams(dimension_semantics=("parallel",)),
    )(
        x_flat,
        jnp.asarray(wh_flag.reshape(R, 1)),
        jnp.asarray(mult.reshape(R, 1)),
        jnp.asarray(xs.reshape(R, 1)),
        jnp.asarray(ys.reshape(R, 1)),
        jnp.asarray(cx.reshape(1, HW)),
        jnp.asarray(cy.reshape(1, HW)),
    )

    # (B, HW, A*D) row-major == (B, HW*A, D) row-major -> free view, no transpose.
    return out.reshape(B, HW * A, D)


# -----------------------------------------------------------------------------
# Module wrapper (mirrors YOYOv3DetHead)
# -----------------------------------------------------------------------------
class YOYOv3DetHeadPallas:
    def __init__(self, inp_dim, num_classes, anchors, istrain):
        self.inp_dim = inp_dim
        self.num_classes = num_classes
        self.istrain = istrain
        pairs = [(anchors[i], anchors[i + 1]) for i in range(0, len(anchors), 2)]
        self.anchors = [pairs[:3], pairs[3:6], pairs[6:]]

    def __call__(self, inputs):
        # .cuda()/.cpu() transfers in the PyTorch code are device no-ops here.
        return [
            predict_transform_pallas(inputs[i], self.inp_dim, self.anchors[i], self.num_classes)
            for i in range(len(inputs))
        ]


# -----------------------------------------------------------------------------
# Pure-JAX reference (mirrors the original predict_transform) for verification
# -----------------------------------------------------------------------------
def predict_transform_ref(pred, inp_dim, anchors, num_classes):
    B, C, H, W = pred.shape
    stride = inp_dim // H
    G = H
    D = 5 + num_classes
    A = len(anchors)
    p = pred.astype(jnp.float32).reshape(B, D * A, G * G).transpose(0, 2, 1).reshape(B, G * G * A, D)
    anch = jnp.asarray(anchors, jnp.float32) / stride

    xy = jax.nn.sigmoid(p[..., 0:2])
    obj = jax.nn.sigmoid(p[..., 4:5])
    cls = jax.nn.sigmoid(p[..., 5:])

    g = jnp.arange(G)
    a_, b_ = jnp.meshgrid(g, g)                       # a_[i,j]=j, b_[i,j]=i
    x_off = a_.reshape(-1, 1).astype(jnp.float32)
    y_off = b_.reshape(-1, 1).astype(jnp.float32)
    xy_off = jnp.concatenate([x_off, y_off], 1)
    xy_off = jnp.tile(xy_off, (1, A)).reshape(-1, 2)[None]
    xy = xy + xy_off

    anch_rep = jnp.tile(anch, (G * G, 1))[None]
    wh = jnp.exp(p[..., 2:4]) * anch_rep

    box = jnp.concatenate([xy, wh], -1) * stride
    return jnp.concatenate([box, obj, cls], -1)


# -----------------------------------------------------------------------------
if __name__ == "__main__":
    key = jax.random.PRNGKey(0)

    inp_dim = 64
    num_classes = 3
    batch = 2
    anchors_flat = [10, 13, 16, 30, 33, 23, 30, 61, 62, 45, 59, 119, 116, 90, 156, 198, 373, 326]

    head = YOYOv3DetHeadPallas(inp_dim, num_classes, anchors_flat, istrain=False)

    A, D = 3, 5 + num_classes
    grids = (4, 8, 16)                                # three detection scales
    keys = jax.random.split(key, len(grids))
    inputs = [
        jax.random.normal(k, (batch, A * D, g, g), dtype=jnp.float32)
        for k, g in zip(keys, grids)
    ]

    preds = head(inputs)
    preds = [jax.block_until_ready(p) for p in preds]

    # verify against the pure-JAX reference implementation
    for i, x in enumerate(inputs):
        ref = predict_transform_ref(x, inp_dim, head.anchors[i], num_classes)
        np.testing.assert_allclose(np.asarray(preds[i]), np.asarray(ref), rtol=1e-5, atol=1e-5)
        assert preds[i].shape == (batch, grids[i] * grids[i] * A, D)

    print("KERNEL_OK")
</pallas_src>

<mosaic_0001>
module attributes {stable_mosaic.version = 11 : i64} {
  func.func @_det_head_kernel(%arg0: i32, %arg1: memref<1x24x16xf32, #tpu.memory_space<vmem>>, %arg2: memref<24x1xf32, #tpu.memory_space<vmem>>, %arg3: memref<24x1xf32, #tpu.memory_space<vmem>>, %arg4: memref<24x1xf32, #tpu.memory_space<vmem>>, %arg5: memref<24x1xf32, #tpu.memory_space<vmem>>, %arg6: memref<1x16xf32, #tpu.memory_space<vmem>>, %arg7: memref<1x16xf32, #tpu.memory_space<vmem>>, %arg8: memref<1x16x24xf32, #tpu.memory_space<vmem>>) attributes {dimension_semantics = [#tpu.dimension_semantics<parallel>], iteration_bounds = array<i64: 2>, scalar_prefetch = 0 : i64, scratch_operands = 0 : i64, tpu.core_type = #tpu.core_type<tc>, window_params = [{transform_indices = @transform_0, window_bounds = array<i64: 1, 24, 16>}, {pipeline_mode = #tpu.pipeline_mode<synchronous>, transform_indices = @transform_1, window_bounds = array<i64: 24, 1>}, {pipeline_mode = #tpu.pipeline_mode<synchronous>, transform_indices = @transform_2, window_bounds = array<i64: 24, 1>}, {pipeline_mode = #tpu.pipeline_mode<synchronous>, transform_indices = @transform_3, window_bounds = array<i64: 24, 1>}, {pipeline_mode = #tpu.pipeline_mode<synchronous>, transform_indices = @transform_4, window_bounds = array<i64: 24, 1>}, {pipeline_mode = #tpu.pipeline_mode<synchronous>, transform_indices = @transform_5, window_bounds = array<i64: 1, 16>}, {pipeline_mode = #tpu.pipeline_mode<synchronous>, transform_indices = @transform_6, window_bounds = array<i64: 1, 16>}, {transform_indices = @transform_7, window_bounds = array<i64: 1, 16, 24>}]} {
    %c0 = arith.constant 0 : index
    %c0_0 = arith.constant 0 : index
    %c0_1 = arith.constant 0 : index
    %0 = vector.load %arg1[%c0, %c0_0, %c0_1] : memref<1x24x16xf32, #tpu.memory_space<vmem>>, vector<1x24x16xf32>
    %1 = vector.shape_cast %0 : vector<1x24x16xf32> to vector<24x16xf32>
    %c0_2 = arith.constant 0 : index
    %c0_3 = arith.constant 0 : index
    %2 = vector.load %arg2[%c0_2, %c0_3] : memref<24x1xf32, #tpu.memory_space<vmem>>, vector<24x1xf32>
    %cst = arith.constant 5.000000e-01 : f32
    %3 = vector.broadcast %cst : f32 to vector<24x1xf32>
    %4 = arith.cmpf ogt, %2, %3 : vector<24x1xf32>
    %cst_4 = arith.constant 0.000000e+00 : f32
    %5 = vector.broadcast %cst_4 : f32 to vector<24x16xf32>
    %6 = arith.subf %5, %1 : vector<24x16xf32>
    %7 = vector.shape_cast %4 : vector<24x1xi1> to vector<24x1xi1>
    %8 = vector.broadcast %7 : vector<24x1xi1> to vector<24x16xi1>
    %9 = arith.select %8, %1, %6 : vector<24x16xi1>, vector<24x16xf32>
    %10 = math.exp %9 : vector<24x16xf32>
    %cst_5 = arith.constant 1.000000e+00 : f32
    %11 = vector.broadcast %cst_5 : f32 to vector<24x16xf32>
    %12 = arith.addf %11, %10 : vector<24x16xf32>
    %cst_6 = arith.constant 1.000000e+00 : f32
    %13 = vector.broadcast %cst_6 : f32 to vector<24x16xf32>
    %14 = arith.divf %13, %12 : vector<24x16xf32>
    %15 = vector.shape_cast %4 : vector<24x1xi1> to vector<24x1xi1>
    %16 = vector.broadcast %15 : vector<24x1xi1> to vector<24x16xi1>
    %17 = arith.select %16, %10, %14 : vector<24x16xi1>, vector<24x16xf32>
    %c0_7 = arith.constant 0 : index
    %c0_8 = arith.constant 0 : index
    %18 = vector.load %arg3[%c0_7, %c0_8] : memref<24x1xf32, #tpu.memory_space<vmem>>, vector<24x1xf32>
    %19 = vector.broadcast %18 : vector<24x1xf32> to vector<24x16xf32>
    %20 = arith.mulf %17, %19 : vector<24x16xf32>
    %c0_9 = arith.constant 0 : index
    %c0_10 = arith.constant 0 : index
    %21 = vector.load %arg4[%c0_9, %c0_10] : memref<24x1xf32, #tpu.memory_space<vmem>>, vector<24x1xf32>
    %c0_11 = arith.constant 0 : index
    %c0_12 = arith.constant 0 : index
    %22 = vector.load %arg6[%c0_11, %c0_12] : memref<1x16xf32, #tpu.memory_space<vmem>>, vector<1x16xf32>
    %23 = vector.broadcast %21 : vector<24x1xf32> to vector<24x16xf32>
    %24 = vector.broadcast %22 : vector<1x16xf32> to vector<24x16xf32>
    %25 = arith.mulf %23, %24 : vector<24x16xf32>
    %26 = arith.addf %20, %25 : vector<24x16xf32>
    %c0_13 = arith.constant 0 : index
    %c0_14 = arith.constant 0 : index
    %27 = vector.load %arg5[%c0_13, %c0_14] : memref<24x1xf32, #tpu.memory_space<vmem>>, vector<24x1xf32>
    %c0_15 = arith.constant 0 : index
    %c0_16 = arith.constant 0 : index
    %28 = vector.load %arg7[%c0_15, %c0_16] : memref<1x16xf32, #tpu.memory_space<vmem>>, vector<1x16xf32>
    %29 = vector.broadcast %27 : vector<24x1xf32> to vector<24x16xf32>
    %30 = vector.broadcast %28 : vector<1x16xf32> to vector<24x16xf32>
    %31 = arith.mulf %29, %30 : vector<24x16xf32>
    %32 = arith.addf %26, %31 : vector<24x16xf32>
    %33 = tpu.transpose %32, [1, 0] : vector<24x16xf32> -> vector<16x24xf32>
    %c0_17 = arith.constant 0 : index
    %c0_18 = arith.constant 0 : index
    %c0_19 = arith.constant 0 : index
    %34 = vector.load %arg8[%c0_17, %c0_18, %c0_19] : memref<1x16x24xf32, #tpu.memory_space<vmem>>, vector<1x16x24xf32>
    %35 = vector.shape_cast %34 : vector<1x16x24xf32> to vector<16x24xf32>
    %36 = vector.shape_cast %33 : vector<16x24xf32> to vector<1x16x24xf32>
    tpu.vector_store %arg8[%c0_17, %c0_18, %c0_19], %36 {strides = array<i32>} : memref<1x16x24xf32, #tpu.memory_space<vmem>>, vector<1x16x24xf32>,
    return
  }
  func.func @transform_0(%arg0: i32) -> (i32, i32, i32) {
    %c0_i32 = arith.constant 0 : i32
    %c0_i32_0 = arith.constant 0 : i32
    %c0_i32_1 = arith.constant 0 : i32
    return %arg0, %c0_i32, %c0_i32_0 : i32, i32, i32
  }
  func.func @transform_1(%arg0: i32) -> (i32, i32) {
    %c0_i32 = arith.constant 0 : i32
    %c0_i32_0 = arith.constant 0 : i32
    %c0_i32_1 = arith.constant 0 : i32
    return %c0_i32, %c0_i32_0 : i32, i32
  }
  func.func @transform_2(%arg0: i32) -> (i32, i32) {
    %c0_i32 = arith.constant 0 : i32
    %c0_i32_0 = arith.constant 0 : i32
    %c0_i32_1 = arith.constant 0 : i32
    return %c0_i32, %c0_i32_0 : i32, i32
  }
  func.func @transform_3(%arg0: i32) -> (i32, i32) {
    %c0_i32 = arith.constant 0 : i32
    %c0_i32_0 = arith.constant 0 : i32
    %c0_i32_1 = arith.constant 0 : i32
    return %c0_i32, %c0_i32_0 : i32, i32
  }
  func.func @transform_4(%arg0: i32) -> (i32, i32) {
    %c0_i32 = arith.constant 0 : i32
    %c0_i32_0 = arith.constant 0 : i32
    %c0_i32_1 = arith.constant 0 : i32
    return %c0_i32, %c0_i32_0 : i32, i32
  }
  func.func @transform_5(%arg0: i32) -> (i32, i32) {
    %c0_i32 = arith.constant 0 : i32
    %c0_i32_0 = arith.constant 0 : i32
    %c0_i32_1 = arith.constant 0 : i32
    return %c0_i32, %c0_i32_0 : i32, i32
  }
  func.func @transform_6(%arg0: i32) -> (i32, i32) {
    %c0_i32 = arith.constant 0 : i32
    %c0_i32_0 = arith.constant 0 : i32
    %c0_i32_1 = arith.constant 0 : i32
    return %c0_i32, %c0_i32_0 : i32, i32
  }
  func.func @transform_7(%arg0: i32) -> (i32, i32, i32) {
    %c0_i32 = arith.constant 0 : i32
    %c0_i32_0 = arith.constant 0 : i32
    %c0_i32_1 = arith.constant 0 : i32
    return %arg0, %c0_i32, %c0_i32_0 : i32, i32, i32
  }
}

</mosaic_0001>

<llo_original>
// kernel: tpu_custom_call.1
$region0: #{tpu_custom_call.1}
  #allocation0 [shape = 'u32[]', space=smem, size = 0x4, offset = 0x4, fixed_abs, tag = 'smem constant byte address 0x4 - core index']
  #allocation1 [shape = 'u32[72,128]{1,0:T(1,128)}', space=vmem, size = 0x9000, scoped, tag = 'internal scratch']
  %s0 = inlined_call_operand.vmem [shape: f32[2,24,16], index: 0, kind: input, shape index: {}]
  %s1 = inlined_call_operand.vmem [shape: f32[24,1], index: 1, kind: input, shape index: {}]
  %s2 = inlined_call_operand.vmem [shape: f32[24,1], index: 2, kind: input, shape index: {}]
  %s3 = inlined_call_operand.vmem [shape: f32[24,1], index: 3, kind: input, shape index: {}]
  %s4 = inlined_call_operand.vmem [shape: f32[24,1], index: 4, kind: input, shape index: {}]
  %s5 = inlined_call_operand.vmem [shape: f32[1,16], index: 5, kind: input, shape index: {}]
  %s6 = inlined_call_operand.vmem [shape: f32[1,16], index: 6, kind: input, shape index: {}]
  %s7 = inlined_call_operand.hbm [shape: f32[2,16,24], index: 7, kind: output, shape index: {}]
  %s8 = sld [smem:[#allocation0]]
  $region61: #{tpu_custom_call.1} parent=0
    _
  %s10 = ssub.s32 1, %s8
  %s11 = scalar_select 0, %s10, %s8
  $region1: #{tpu_custom_call.1} parent=0
    #allocation2 [shape = 'u8[16384]{0}', space=vmem, size = 0x4000, scoped, tag = 'output window, operand 0']
    #allocation3 [shape = 's32[2]{0}', space=sflag, size = 0x8, scoped, tag = 'scoped memory for tpu_custom_call.1']
    %12 = vsyncpa [#allocation3], 0
    %s13 = scalar_lea.sflag [#allocation3], 1
    %14 = vsyncpa %s13, 0
    loop: start=0, step=1, limit=4
    $region2: #{tpu_custom_call.1} parent=1 // loop_pre_header
      _
    $region3: #{tpu_custom_call.1} parent=1 // loop_header
      %s16 = sphi 0, %s20
      %p17 = scmp.ge.s32.totalorder %s16, 4
      %s26 = sphi 0, %s28
      %s29 = sphi 0, %s26
      %s30 = sphi 0, %s29
      %s46 = sphi 0, %s30
      %s50 = sphi 0, %s50
      %s52 = sphi 0, %s50
      %s53 = sphi 0, %s52
      %s67 = sphi 0, %s53
      %s71 = sphi 0, %s71
      %s73 = sphi 0, %s71
      %s74 = sphi 0, %s73
      %s88 = sphi 0, %s74
      %s92 = sphi 0, %s92
      %s94 = sphi 0, %s92
      %s95 = sphi 0, %s94
      %s109 = sphi 0, %s95
      %s113 = sphi 0, %s113
      %s115 = sphi 0, %s113
      %s116 = sphi 0, %s115
      %s130 = sphi 0, %s116
      %s134 = sphi 0, %s134
      %s136 = sphi 0, %s134
      %s137 = sphi 0, %s136
      %s151 = sphi 0, %s137
      %s155 = sphi 0, %s155
      %s157 = sphi 0, %s155
      %s158 = sphi 0, %s157
      %s172 = sphi 0, %s158
      %s178 = sphi 0, %s180
      %s181 = sphi 0, %s178
      %s182 = sphi 0, %s181
      %s198 = sphi 0, %s182
    $region4: #{tpu_custom_call.1} parent=1 // loop_header_branch
      %19 = sbr.rel (%p17) target = $region8
    $region5: #{tpu_custom_call.1} parent=1 // loop_body
      %s21 = ssub.s32 %s16, 1
      %s22 = ssub.s32 %s16, 2
      %s23 = sadd.s32 %s16, 1
      %s24 = ssub.s32 %s16, %s23
      %p25 = scmp.eq.s32.totalorder %s24, 0
      %s27 = sadd.s32 %s26, 1
      %s28 = scalar_select %p25, %s26, %s27
      %p31 = pneg %p25
      %p32 = scmp.eq.s32.totalorder %s16, 1
      %p33 = por %p31, %p32
      %p34 = scmp.ne.s32.totalorder %s26, %s29
      %p35 = scmp.eq.s32.totalorder %s16, 0
      %p36 = por %p34, %p35
      %p37 = scmp.ne.s32.totalorder %s26, %s29
      %p38 = scmp.eq.s32.totalorder %s21, 1
      %p39 = por %p37, %p38
      %p40 = scmp.ne.s32.totalorder %s29, %s30
      %p41 = scmp.eq.s32.totalorder %s21, 0
      %p42 = por %p40, %p41
      %p43 = scmp.ne.s32.totalorder %s29, %s30
      %p44 = scmp.eq.s32.totalorder %s22, 1
      %p45 = por %p43, %p44
      %p47 = scmp.ne.s32.totalorder %s30, %s46
      %p48 = scmp.eq.s32.totalorder %s22, 0
      %p49 = por %p47, %p48
      %s51 = sadd.s32 %s50, 1
      %p54 = scmp.eq.s32.totalorder %s16, 1
      %p55 = scmp.ne.s32.totalorder %s50, %s52
      %p56 = scmp.eq.s32.totalorder %s16, 0
      %p57 = por %p55, %p56
      %p58 = scmp.ne.s32.totalorder %s50, %s52
      %p59 = scmp.eq.s32.totalorder %s21, 1
      %p60 = por %p58, %p59
      %p61 = scmp.ne.s32.totalorder %s52, %s53
      %p62 = scmp.eq.s32.totalorder %s21, 0
      %p63 = por %p61, %p62
      %p64 = scmp.ne.s32.totalorder %s52, %s53
      %p65 = scmp.eq.s32.totalorder %s22, 1
      %p66 = por %p64, %p65
      %p68 = scmp.ne.s32.totalorder %s53, %s67
      %p69 = scmp.eq.s32.totalorder %s22, 0
      %p70 = por %p68, %p69
      %s72 = sadd.s32 %s71, 1
      %p75 = scmp.eq.s32.totalorder %s16, 1
      %p76 = scmp.ne.s32.totalorder %s71, %s73
      %p77 = scmp.eq.s32.totalorder %s16, 0
      %p78 = por %p76, %p77
      %p79 = scmp.ne.s32.totalorder %s71, %s73
      %p80 = scmp.eq.s32.totalorder %s21, 1
      %p81 = por %p79, %p80
      %p82 = scmp.ne.s32.totalorder %s73, %s74
      %p83 = scmp.eq.s32.totalorder %s21, 0
      %p84 = por %p82, %p83
      %p85 = scmp.ne.s32.totalorder %s73, %s74
      %p86 = scmp.eq.s32.totalorder %s22, 1
      %p87 = por %p85, %p86
      %p89 = scmp.ne.s32.totalorder %s74, %s88
      %p90 = scmp.eq.s32.totalorder %s22, 0
      %p91 = por %p89, %p90
      %s93 = sadd.s32 %s92, 1
      %p96 = scmp.eq.s32.totalorder %s16, 1
      %p97 = scmp.ne.s32.totalorder %s92, %s94
      %p98 = scmp.eq.s32.totalorder %s16, 0
      %p99 = por %p97, %p98
      %p100 = scmp.ne.s32.totalorder %s92, %s94
      %p101 = scmp.eq.s32.totalorder %s21, 1
      %p102 = por %p100, %p101
      %p103 = scmp.ne.s32.totalorder %s94, %s95
      %p104 = scmp.eq.s32.totalorder %s21, 0
      %p105 = por %p103, %p104
      %p106 = scmp.ne.s32.totalorder %s94, %s95
      %p107 = scmp.eq.s32.totalorder %s22, 1
      %p108 = por %p106, %p107
      %p110 = scmp.ne.s32.totalorder %s95, %s109
      %p111 = scmp.eq.s32.totalorder %s22, 0
      %p112 = por %p110, %p111
      %s114 = sadd.s32 %s113, 1
      %p117 = scmp.eq.s32.totalorder %s16, 1
      %p118 = scmp.ne.s32.totalorder %s113, %s115
      %p119 = scmp.eq.s32.totalorder %s16, 0
      %p120 = por %p118, %p119
      %p121 = scmp.ne.s32.totalorder %s113, %s115
      %p122 = scmp.eq.s32.totalorder %s21, 1
      %p123 = por %p121, %p122
      %p124 = scmp.ne.s32.totalorder %s115, %s116
      %p125 = scmp.eq.s32.totalorder %s21, 0
      %p126 = por %p124, %p125
      %p127 = scmp.ne.s32.totalorder %s115, %s116
      %p128 = scmp.eq.s32.totalorder %s22, 1
      %p129 = por %p127, %p128
      %p131 = scmp.ne.s32.totalorder %s116, %s130
      %p132 = scmp.eq.s32.totalorder %s22, 0
      %p133 = por %p131, %p132
      %s135 = sadd.s32 %s134, 1
      %p138 = scmp.eq.s32.totalorder %s16, 1
      %p139 = scmp.ne.s32.totalorder %s134, %s136
      %p140 = scmp.eq.s32.totalorder %s16, 0
      %p141 = por %p139, %p140
      %p142 = scmp.ne.s32.totalorder %s134, %s136
      %p143 = scmp.eq.s32.totalorder %s21, 1
      %p144 = por %p142, %p143
      %p145 = scmp.ne.s32.totalorder %s136, %s137
      %p146 = scmp.eq.s32.totalorder %s21, 0
      %p147 = por %p145, %p146
      %p148 = scmp.ne.s32.totalorder %s136, %s137
      %p149 = scmp.eq.s32.totalorder %s22, 1
      %p150 = por %p148, %p149
      %p152 = scmp.ne.s32.totalorder %s137, %s151
      %p153 = scmp.eq.s32.totalorder %s22, 0
      %p154 = por %p152, %p153
      %s156 = sadd.s32 %s155, 1
      %p159 = scmp.eq.s32.totalorder %s16, 1
      %p160 = scmp.ne.s32.totalorder %s155, %s157
      %p161 = scmp.eq.s32.totalorder %s16, 0
      %p162 = por %p160, %p161
      %p163 = scmp.ne.s32.totalorder %s155, %s157
      %p164 = scmp.eq.s32.totalorder %s21, 1
      %p165 = por %p163, %p164
      %p166 = scmp.ne.s32.totalorder %s157, %s158
      %p167 = scmp.eq.s32.totalorder %s21, 0
      %p168 = por %p166, %p167
      %p169 = scmp.ne.s32.totalorder %s157, %s158
      %p170 = scmp.eq.s32.totalorder %s22, 1
      %p171 = por %p169, %p170
      %p173 = scmp.ne.s32.totalorder %s158, %s172
      %p174 = scmp.eq.s32.totalorder %s22, 0
      %p175 = por %p173, %p174
      %s176 = ssub.s32 %s16, %s23
      %p177 = scmp.eq.s32.totalorder %s176, 0
      %s179 = sadd.s32 %s178, 1
      %s180 = scalar_select %p177, %s178, %s179
      %p183 = pneg %p177
      %p184 = scmp.eq.s32.totalorder %s16, 1
      %p185 = por %p183, %p184
      %p186 = scmp.ne.s32.totalorder %s178, %s181
      %p187 = scmp.eq.s32.totalorder %s16, 0
      %p188 = por %p186, %p187
      %p189 = scmp.ne.s32.totalorder %s178, %s181
      %p190 = scmp.eq.s32.totalorder %s21, 1
      %p191 = por %p189, %p190
      %p192 = scmp.ne.s32.totalorder %s181, %s182
      %p193 = scmp.eq.s32.totalorder %s21, 0
      %p194 = por %p192, %p193
      %p195 = scmp.ne.s32.totalorder %s181, %s182
      %p196 = scmp.eq.s32.totalorder %s22, 1
      %p197 = por %p195, %p196
      %p199 = scmp.ne.s32.totalorder %s182, %s198
      %p200 = scmp.eq.s32.totalorder %s22, 0
      %p201 = por %p199, %p200
      %p202 = scmp.le.s32.totalorder 1, %s16
      %p203 = scmp.lt.s32.totalorder %s16, 3
      %p204 = pnand %p202, %p203
      %p205 = pneg %p204
      // Predicated region
      $region9: #{tpu_custom_call.1} parent=5 // pred_check
        _
      $region10: #{tpu_custom_call.1} parent=5 // pred_check_branch
        %207 = sbr.rel (%p204) target = $region12
      $region11: #{tpu_custom_call.1} parent=5 // pred_region
        %s208 = ssub.s32 %s16, 1
        // Predicated region
        $region13: #{tpu_custom_call.1} parent=11 // pred_check
          %p209 = pneg %p63
        $region14: #{tpu_custom_call.1} parent=11 // pred_check_branch
          %211 = sbr.rel (%p209) target = $region16
        $region15: #{tpu_custom_call.1} parent=11 // pred_region
          _
        $region16: #{tpu_custom_call.1} parent=11 // pred_fallthru
          _
        // Predicated region
        $region17: #{tpu_custom_call.1} parent=11 // pred_check
          %p212 = pneg %p84
        $region18: #{tpu_custom_call.1} parent=11 // pred_check_branch
          %214 = sbr.rel (%p212) target = $region20
        $region19: #{tpu_custom_call.1} parent=11 // pred_region
          _
        $region20: #{tpu_custom_call.1} parent=11 // pred_fallthru
          _
        // Predicated region
        $region21: #{tpu_custom_call.1} parent=11 // pred_check
          %p215 = pneg %p105
        $region22: #{tpu_custom_call.1} parent=11 // pred_check_branch
          %217 = sbr.rel (%p215) target = $region24
        $region23: #{tpu_custom_call.1} parent=11 // pred_region
          _
        $region24: #{tpu_custom_call.1} parent=11 // pred_fallthru
          _
        // Predicated region
        $region25: #{tpu_custom_call.1} parent=11 // pred_check
          %p218 = pneg %p126
        $region26: #{tpu_custom_call.1} parent=11 // pred_check_branch
          %220 = sbr.rel (%p218) target = $region28
        $region27: #{tpu_custom_call.1} parent=11 // pred_region
          _
        $region28: #{tpu_custom_call.1} parent=11 // pred_fallthru
          _
        // Predicated region
        $region29: #{tpu_custom_call.1} parent=11 // pred_check
          %p221 = pneg %p147
        $region30: #{tpu_custom_call.1} parent=11 // pred_check_branch
          %223 = sbr.rel (%p221) target = $region32
        $region31: #{tpu_custom_call.1} parent=11 // pred_region
          _
        $region32: #{tpu_custom_call.1} parent=11 // pred_fallthru
          _
        // Predicated region
        $region33: #{tpu_custom_call.1} parent=11 // pred_check
          %p224 = pneg %p168
        $region34: #{tpu_custom_call.1} parent=11 // pred_check_branch
          %226 = sbr.rel (%p224) target = $region36
        $region35: #{tpu_custom_call.1} parent=11 // pred_region
          _
        $region36: #{tpu_custom_call.1} parent=11 // pred_fallthru
          _
      $region12: #{tpu_custom_call.1} parent=5 // pred_fallthru
        _
      %p227 = scmp.lt.s32.totalorder %s16, 2
      // Predicated region
      $region37: #{tpu_custom_call.1} parent=5 // pred_check
        %p228 = pneg %p227
      $region38: #{tpu_custom_call.1} parent=5 // pred_check_branch
        %230 = sbr.rel (%p228) target = $region40
      $region39: #{tpu_custom_call.1} parent=5 // pred_region
        // Predicated region
        $region41: #{tpu_custom_call.1} parent=39 // pred_check
          %p231 = pneg %p36
        $region42: #{tpu_custom_call.1} parent=39 // pred_check_branch
          %233 = sbr.rel (%p231) target = $region44
        $region43: #{tpu_custom_call.1} parent=39 // pred_region
          %p234 = scmp.lt.s32.totalorder %s16, 1
          %s235 = scalar_select %p234, %s16, 1
          %s236 = smul.addr %s235, 3
          %s237 = smul.addr %s236, 8
          %s238 = scalar_lea.vmem %s0, %s237
        $region44: #{tpu_custom_call.1} parent=39 // pred_fallthru
          _
      $region40: #{tpu_custom_call.1} parent=5 // pred_fallthru
        _
      %p239 = scmp.le.s32.totalorder 1, %s16
      %p240 = scmp.lt.s32.totalorder %s16, 3
      %p241 = pnand %p239, %p240
      %p242 = pneg %p241
      // Predicated region
      $region45: #{tpu_custom_call.1} parent=5 // pred_check
        _
      $region46: #{tpu_custom_call.1} parent=5 // pred_check_branch
        %244 = sbr.rel (%p241) target = $region48
      $region47: #{tpu_custom_call.1} parent=5 // pred_region
        %s245 = ssub.s32 %s16, 1
        %p246 = scmp.lt.s32.totalorder %s21, 1
        %s247 = scalar_select %p246, %s21, 1
        %s248 = smul.addr %s247, 3
        %s249 = smul.addr %s248, 8
        %s250 = scalar_lea.vmem %s0, %s249
        %p251 = pneg %p42
        %p252 = pneg %p39
        %p253 = pneg %p63
        %p254 = pneg %p60
        %p255 = pneg %p84
        %p256 = pneg %p81
        %p257 = pneg %p105
        %p258 = pneg %p102
        %p259 = pneg %p126
        %p260 = pneg %p123
        %p261 = pneg %p147
        %p262 = pneg %p144
        %p263 = pneg %p168
        %p264 = pneg %p165
        %p265 = pneg %p194
        %p266 = pneg %p191
        %s267 = sand.u32 %s181, 1
        %s268 = scalar_lea.sflag [#allocation3], %s267
        %s269 = sand.u32 %s181, 1
        %s270 = smul.addr %s269, 16
        %s271 = scalar_lea.vmem [#allocation2], %s270
        %p272 = scmp.lt.s32.totalorder %s21, 1
        %s273 = scalar_select %p272, %s21, 1
        %s274 = smul.addr %s273, 3
        %s275 = smul.addr %s274, 8
        %s276 = scalar_lea.vmem %s0, %s275
        %v277 = vld [vmem:[%s276] sm:$0xff]
        %v278 = vld [vmem:[%s276 + $0x8] sm:$0xff]
        %v279 = vld [vmem:[%s276 + $0x10] sm:$0xff]
        %v280 = vld [vmem:[%s1] sm:$0xff]
        %v281 = vld [vmem:[%s1 + $0x8] sm:$0xff]
        %v282 = vld [vmem:[%s1 + $0x10] sm:$0xff]
        %vm283 = vcmp.gt.f32.partialorder %v280, 0.5
        %vm284 = vcmp.gt.f32.partialorder %v281, 0.5
        %vm285 = vcmp.gt.f32.partialorder %v282, 0.5
        %v286 = vsub.f32 0.0, %v277
        %v287 = vsub.f32 0.0, %v278
        %v288 = vsub.f32 0.0, %v279
        %v289 = vsel %vm283, 1, 0
        %v290 = vsel %vm284, 1, 0
        %v291 = vsel %vm285, 1, 0
        %292 = vset.pattern.permute.xlu0 0
        %293 = vperm.xlu0 %292, %v289
        %v294 = vpop.permute.xlu0 %293
        %295 = vset.pattern.permute.xlu0 0
        %296 = vperm.xlu0 %295, %v290
        %v297 = vpop.permute.xlu0 %296
        %298 = vset.pattern.permute.xlu0 0
        %299 = vperm.xlu0 %298, %v291
        %v300 = vpop.permute.xlu0 %299
        %vm301 = vcmp.eq.s32.totalorder %v294, 1
        %vm302 = vcmp.eq.s32.totalorder %v297, 1
        %vm303 = vcmp.eq.s32.totalorder %v300, 1
        %v304 = vsel %vm301, %v277, %v286
        %v305 = vsel %vm302, %v278, %v287
        %v306 = vsel %vm303, %v279, %v288
        %v307 = vmul.f32 %v304, 1.442695
        %v308 = vpow.pop %v307
        %v309 = vmul.f32 %v305, 1.442695
        %v310 = vpow.pop %v309
        %v311 = vmul.f32 %v306, 1.442695
        %v312 = vpow.pop %v311
        %v313 = vadd.f32 %v308, 1.0
        %v314 = vadd.f32 %v310, 1.0
        %v315 = vadd.f32 %v312, 1.0
        %v316 = vrcp.pop %v313
        %v317 = vmul.f32 %v313, %v316
        %v318 = vsub.f32 1.0, %v317
        %v319 = vmul.f32 %v316, %v318
        %v320 = vadd.f32 %v316, %v319
        %vm321 = vweird.f32 %v313
        %vm322 = vweird.f32 %v316
        %vm323 = vmor %vm321, %vm322
        %v324 = vsel %vm323, %v316, %v320
        %v325 = vand.u32 2147483647, %v313
        %vm326 = vcmp.eq.f32.partialorder %v325, 8.507059e+37
        %v327 = vand.u32 %v313, 2147483648
        %v328 = vor.u32 1.1754944e-38, %v327
        %v329 = vsel %vm326, %v328, %v324
        %v330 = vmul.f32 1.0, %v329
        %v331 = vrcp.pop %v314
        %v332 = vmul.f32 %v314, %v331
        %v333 = vsub.f32 1.0, %v332
        %v334 = vmul.f32 %v331, %v333
        %v335 = vadd.f32 %v331, %v334
        %vm336 = vweird.f32 %v314
        %vm337 = vweird.f32 %v331
        %vm338 = vmor %vm336, %vm337
        %v339 = vsel %vm338, %v331, %v335
        %v340 = vand.u32 2147483647, %v314
        %vm341 = vcmp.eq.f32.partialorder %v340, 8.507059e+37
        %v342 = vand.u32 %v314, 2147483648
        %v343 = vor.u32 1.1754944e-38, %v342
        %v344 = vsel %vm341, %v343, %v339
        %v345 = vmul.f32 1.0, %v344
        %v346 = vrcp.pop %v315
        %v347 = vmul.f32 %v315, %v346
        %v348 = vsub.f32 1.0, %v347
        %v349 = vmul.f32 %v346, %v348
        %v350 = vadd.f32 %v346, %v349
        %vm351 = vweird.f32 %v315
        %vm352 = vweird.f32 %v346
        %vm353 = vmor %vm351, %vm352
        %v354 = vsel %vm353, %v346, %v350
        %v355 = vand.u32 2147483647, %v315
        %vm356 = vcmp.eq.f32.partialorder %v355, 8.507059e+37
        %v357 = vand.u32 %v315, 2147483648
        %v358 = vor.u32 1.1754944e-38, %v357
        %v359 = vsel %vm356, %v358, %v354
        %v360 = vmul.f32 1.0, %v359
        %v361 = vsel %vm301, %v308, %v330
        %v362 = vsel %vm302, %v310, %v345
        %v363 = vsel %vm303, %v312, %v360
        %v364 = vld [vmem:[%s2] sm:$0xff]
        %v365 = vld [vmem:[%s2 + $0x8] sm:$0xff]
        %v366 = vld [vmem:[%s2 + $0x10] sm:$0xff]
        %368 = vset.pattern.permute.xlu0 0
        %369 = vperm.xlu0 %368, %v364
        %v370 = vpop.permute.xlu0 %369
        %373 = vset.pattern.permute.xlu0 0
        %374 = vperm.xlu0 %373, %v365
        %v375 = vpop.permute.xlu0 %374
        %378 = vset.pattern.permute.xlu0 0
        %379 = vperm.xlu0 %378, %v366
        %v380 = vpop.permute.xlu0 %379
        %v382 = vmul.f32 %v361, %v370
        %v383 = vmul.f32 %v362, %v375
        %v384 = vmul.f32 %v363, %v380
        %v385 = vld [vmem:[%s3] sm:$0xff]
        %v386 = vld [vmem:[%s3 + $0x8] sm:$0xff]
        %v387 = vld [vmem:[%s3 + $0x10] sm:$0xff]
        %v388 = vld [vmem:[%s5] sm:$0x1]
        %390 = vset.pattern.permute.xlu0 0
        %391 = vperm.xlu0 %390, %v385
        %v392 = vpop.permute.xlu0 %391
        %395 = vset.pattern.permute.xlu0 0
        %396 = vperm.xlu0 %395, %v386
        %v397 = vpop.permute.xlu0 %396
        %400 = vset.pattern.permute.xlu0 0
        %401 = vperm.xlu0 %400, %v387
        %v402 = vpop.permute.xlu0 %401
        %v405 = vperm.slane %v388, 0
        %v407 = vmul.f32 %v392, %v405
        %v408 = vmul.f32 %v397, %v405
        %v409 = vmul.f32 %v402, %v405
        %v410 = vadd.f32 %v382, %v407
        %v411 = vadd.f32 %v383, %v408
        %v412 = vadd.f32 %v384, %v409
        %v413 = vld [vmem:[%s4] sm:$0xff]
        %v414 = vld [vmem:[%s4 + $0x8] sm:$0xff]
        %v415 = vld [vmem:[%s4 + $0x10] sm:$0xff]
        %v416 = vld [vmem:[%s6] sm:$0x1]
        %418 = vset.pattern.permute.xlu0 0
        %419 = vperm.xlu0 %418, %v413
        %v420 = vpop.permute.xlu0 %419
        %423 = vset.pattern.permute.xlu0 0
        %424 = vperm.xlu0 %423, %v414
        %v425 = vpop.permute.xlu0 %424
        %428 = vset.pattern.permute.xlu0 0
        %429 = vperm.xlu0 %428, %v415
        %v430 = vpop.permute.xlu0 %429
        %v433 = vperm.slane %v416, 0
        %v435 = vmul.f32 %v420, %v433
        %v436 = vmul.f32 %v425, %v433
        %v437 = vmul.f32 %v430, %v433
        %v438 = vadd.f32 %v410, %v435
        %v439 = vadd.f32 %v411, %v436
        %v440 = vadd.f32 %v412, %v437
        %441 = vxpose.xlu0.b32.start [1/16] %v438, 128
        %442 = vxpose.xlu0.b32.cont [2/16] %v439, 128
        %443 = vxpose.xlu0.b32.cont [3/16] %v440, 128
        %444 = vxpose.xlu0.b32.cont [4/16] 0.0, 128
        %445 = vxpose.xlu0.b32.cont [5/16] 0.0, 128
        %446 = vxpose.xlu0.b32.cont [6/16] 0.0, 128
        %447 = vxpose.xlu0.b32.cont [7/16] 0.0, 128
        %448 = vxpose.xlu0.b32.cont [8/16] 0.0, 128
        %449 = vxpose.xlu0.b32.cont [9/16] 0.0, 128
        %450 = vxpose.xlu0.b32.cont [10/16] 0.0, 128
        %451 = vxpose.xlu0.b32.cont [11/16] 0.0, 128
        %452 = vxpose.xlu0.b32.cont [12/16] 0.0, 128
        %453 = vxpose.xlu0.b32.cont [13/16] 0.0, 128
        %454 = vxpose.xlu0.b32.cont [14/16] 0.0, 128
        %455 = vxpose.xlu0.b32.cont [15/16] 0.0, 128
        %456 = vxpose.xlu0.b32.end [16/16] 0.0, 128
        %v457 = vpop.trf.xlu0
        %v458 = vpop.trf.xlu0
        %v459 = vpop.trf.xlu0
        %v460 = vpop.trf.xlu0
        %v461 = vpop.trf.xlu0
        %v462 = vpop.trf.xlu0
        %v463 = vpop.trf.xlu0
        %v464 = vpop.trf.xlu0
        %v465 = vpop.trf.xlu0
        %v466 = vpop.trf.xlu0
        %v467 = vpop.trf.xlu0
        %v468 = vpop.trf.xlu0
        %v469 = vpop.trf.xlu0
        %v470 = vpop.trf.xlu0
        %v471 = vpop.trf.xlu0
        %v472 = vpop.trf.xlu0
        %vm473 = vcmask 195584
        %474 = vst.msk [vmem:[%s271] sm:$0xff] %vm473, %v457
        %475 = vst.msk [vmem:[%s271 + $0x8] sm:$0xff] %vm473, %v458
        %s476 = sand.u32 %s181, 1
        %s477 = scalar_lea.sflag [#allocation3], %s476
        %s478 = sand.u32 %s181, 1
        %s479 = smul.addr %s478, 16
        %s480 = scalar_lea.vmem [#allocation2], %s479
        // Predicated region
        $region49: #{tpu_custom_call.1} parent=47 // pred_check
          %p481 = pneg %p191
        $region50: #{tpu_custom_call.1} parent=47 // pred_check_branch
          %483 = sbr.rel (%p481) target = $region52
        $region51: #{tpu_custom_call.1} parent=47 // pred_region
          %485 = vsyncadd %s477, 0
          %s486 = smul.addr %s21, 2
          %s487 = smul.addr %s486, 8
          %s488 = scalar_lea.hbm %s7, %s487
          %s489 = sshll.u32 %s480, 4
          %s490 = int_to_ptr.vmem [resolvable:$true] %s489
          %s491 = sshll.u32 %s488, 4
          %s492 = int_to_ptr.hbm [resolvable:$true] %s491
          %497 = dma.vmem_to_hbm [thread:$0]  %s490, 256, %s492, %s477, 128, 128, 8
        $region52: #{tpu_custom_call.1} parent=47 // pred_fallthru
          _
      $region48: #{tpu_custom_call.1} parent=5 // pred_fallthru
        _
      %p498 = scmp.le.s32.totalorder 2, %s16
      // Predicated region
      $region53: #{tpu_custom_call.1} parent=5 // pred_check
        %p499 = pneg %p498
      $region54: #{tpu_custom_call.1} parent=5 // pred_check_branch
        %501 = sbr.rel (%p499) target = $region56
      $region55: #{tpu_custom_call.1} parent=5 // pred_region
        %s502 = ssub.s32 %s16, 2
        // Predicated region
        $region57: #{tpu_custom_call.1} parent=55 // pred_check
          %p503 = pneg %p197
        $region58: #{tpu_custom_call.1} parent=55 // pred_check_branch
          %505 = sbr.rel (%p503) target = $region60
        $region59: #{tpu_custom_call.1} parent=55 // pred_region
          %s506 = sand.u32 %s182, 1
          %s507 = scalar_lea.sflag [#allocation3], %s506
          %s508 = sand.u32 %s182, 1
          %s509 = smul.addr %s508, 16
          %s510 = scalar_lea.vmem [#allocation2], %s509
          %512 = dma.done %s507, 256
        $region60: #{tpu_custom_call.1} parent=55 // pred_fallthru
          _
      $region56: #{tpu_custom_call.1} parent=5 // pred_fallthru
        _
    $region6: #{tpu_custom_call.1} parent=1 // loop_footer
      %s20 = sadd.s32 1, %s16
    $region7: #{tpu_custom_call.1} parent=1 // loop_footer_branch
      %15 = sbr.rel target = $region3
    $region8: #{tpu_custom_call.1} parent=1 // loop_exit
      _
    %513 = vsyncpa [#allocation3], 1
    %s514 = scalar_lea.sflag [#allocation3], 1
    %515 = vsyncpa %s514, 1

</llo_original>
